<compile_context>
chip_gen: v7x
topology: tpu7x:2x2x1
jax: 0.10.0
libtpu: 0.0.40
codegen_flags: <defaults>
</compile_context>

<pallas_src>
import jax
import jax.numpy as jnp
from jax import lax
from jax.experimental import pallas as pl
from jax.experimental.pallas import tpu as pltpu

_SLAB_COLS = 128          # one full lane width
_NEG_SLOPE = 0.01         # torch.nn.LeakyReLU default


def _round_up(v, m):
    return (v + m - 1) // m * m


def _layer_dims(input_dim):
    # (out, in) per layer, matching nn.Linear(in, out) order of the PyTorch module.
    return [(input_dim, input_dim), (8, input_dim), (4, 8), (2, 4), (1, 2)]


def _slab_layout(dims):
    """Static row offsets (sublane-aligned) for each layer's weight block."""
    row_offs = []
    r = 0
    for (o, _) in dims:
        row_offs.append(r)
        r = _round_up(r + o, 8)
    slab_rows = max(_round_up(r, 8), 8)
    bias_col = _SLAB_COLS - len(dims)        # biases live as short columns on the right
    assert max(i for _, i in dims) <= bias_col
    assert max(o for o, _ in dims) <= slab_rows
    return row_offs, slab_rows, bias_col


def pack_params(params, dims, row_offs, slab_rows, bias_col):
    """Pack all weights (out,in) and biases (out,) into one (slab_rows,128) f32 slab."""
    slab = jnp.zeros((slab_rows, _SLAB_COLS), jnp.float32)
    for li, ((w, b), (o, i), r0) in enumerate(zip(params, dims, row_offs)):
        slab = slab.at[r0:r0 + o, 0:i].set(w.astype(jnp.float32))
        slab = slab.at[0:o, bias_col + li].set(b.astype(jnp.float32))
    return slab


def make_dnn_kernel(dims, row_offs, bias_col, compute_dtype):
    n = len(dims)

    def kernel(w_ref, x_ref, o_ref):
        # x_ref: (TB, D) -- batch on sublanes as delivered by the caller (no wrapper
        # transpose).  w_ref: resident packed f32 slab.  o_ref: (1, TB) lane-dense.
        x = x_ref[...].astype(compute_dtype)
        h = None
        for li, ((o, i), r0) in enumerate(zip(dims, row_offs)):
            w = w_ref[r0:r0 + o, 0:i].astype(compute_dtype)            # (o, i)
            b = w_ref[0:o, bias_col + li:bias_col + li + 1]             # (o, 1) f32
            if li == 0:
                # (o, D) x (TB, D) contracting D -> (o, TB): trans-RHS matmul fuses
                # the x transpose into the MXU pass; later layers stay lane-dense.
                z = lax.dot_general(w, x, (((1,), (1,)), ((), ())),
                                    preferred_element_type=jnp.float32) + b
            else:
                z = jnp.dot(w, h.astype(compute_dtype),
                            preferred_element_type=jnp.float32) + b
            if li < n - 1:
                h = jnp.where(z > 0, z, _NEG_SLOPE * z)    # LeakyReLU in f32 (VPU)
            else:
                # Sigmoid: exp + approx reciprocal both go to the EUP slot.
                o_ref[...] = pl.reciprocal(1.0 + jnp.exp(-z), approx=True)

    return kernel


def dnn_forward(x, params, *, block_b=8192, compute_dtype=jnp.bfloat16):
    """Forward pass. x: (B, D) float array (f32 or bf16). Returns (B,) f32 probs."""
    B, D = x.shape
    dims = [(w.shape[0], w.shape[1]) for (w, _) in params]
    row_offs, slab_rows, bias_col = _slab_layout(dims)
    slab = pack_params(params, dims, row_offs, slab_rows, bias_col)

    # Batch tile: multiple of 128 lanes; large enough to amortize per-grid-step
    # overhead; cdiv(B,2) keeps >=2 grid steps for large B so both v7x TCs get work.
    tb = min(block_b, _round_up(pl.cdiv(max(B, 1), 2), 128))
    b_pad = _round_up(B, tb)
    if b_pad != B:
        # Only pass touching x besides the kernel itself; skipped when tb | B.
        x_in = jnp.pad(x, ((0, b_pad - B), (0, 0)))
    else:
        x_in = x

    total_mac = sum(o * i for (o, i) in dims)
    cost = pl.CostEstimate(
        flops=2 * total_mac * b_pad,
        transcendentals=2 * b_pad,
        bytes_accessed=(b_pad * D * jnp.dtype(x_in.dtype).itemsize
                        + b_pad * 4
                        + slab_rows * _SLAB_COLS * 4),
    )

    kernel = make_dnn_kernel(dims, row_offs, bias_col, compute_dtype)
    out = pl.pallas_call(
        kernel,
        out_shape=jax.ShapeDtypeStruct((1, b_pad), jnp.float32),
        grid_spec=pltpu.PrefetchScalarGridSpec(
            num_scalar_prefetch=0,
            grid=(b_pad // tb,),
            in_specs=[
                # Packed weight slab: constant block index -> DMA'd once, resident.
                pl.BlockSpec((slab_rows, _SLAB_COLS), lambda i: (0, 0)),
                # Activations: (TB, D) tile marching along the batch axis (no transpose).
                pl.BlockSpec((tb, D), lambda i: (i, 0)),
            ],
            out_specs=pl.BlockSpec((1, tb), lambda i: (0, i)),
        ),
        compiler_params=pltpu.CompilerParams(
            dimension_semantics=("parallel",),   # shard batch grid across TCs on v7x
        ),
        cost_estimate=cost,
    )(slab, x_in)
    # Mirror PyTorch's x.squeeze(1): (1, B_pad) -> (B,)
    return out[0, :B]


def init_params(key, input_dim=14):
    """PyTorch-style uniform(-1/sqrt(fan_in), 1/sqrt(fan_in)) init.

    Weights kept in PyTorch (out, in) layout, biases as (out,).
    """
    params = []
    for (fan_out, fan_in) in _layer_dims(input_dim):
        key, kw, kb = jax.random.split(key, 3)
        bound = 1.0 / float(fan_in) ** 0.5
        w = jax.random.uniform(kw, (fan_out, fan_in), jnp.float32, -bound, bound)
        b = jax.random.uniform(kb, (fan_out,), jnp.float32, -bound, bound)
        params.append((w, b))
    return params


def dnn_ref(x, params):
    """Pure-JAX reference of the PyTorch forward."""
    h = x.astype(jnp.float32)
    for li, (w, b) in enumerate(params):
        h = h @ w.T + b
        if li < len(params) - 1:
            h = jnp.where(h > 0, h, _NEG_SLOPE * h)
    return jax.nn.sigmoid(h)[:, 0]


if __name__ == "__main__":
    key = jax.random.PRNGKey(0)
    key, kx = jax.random.split(key)

    B, D = 8, 14
    x = jax.random.normal(kx, (B, D), dtype=jnp.float32)
    params = init_params(key, input_dim=D)

    y = jax.block_until_ready(dnn_forward(x, params))
    assert y.shape == (B,), y.shape

    y_ref = dnn_ref(x, params)
    assert jnp.allclose(y, y_ref, atol=1e-2, rtol=1e-2), (y, y_ref)
    print("KERNEL_OK")
</pallas_src>

<mosaic_0001>
module attributes {stable_mosaic.version = 11 : i64} {
  func.func @kernel(%arg0: i32, %arg1: memref<48x128xf32, #tpu.memory_space<vmem>>, %arg2: memref<128x14xf32, #tpu.memory_space<vmem>>, %arg3: memref<1x128xf32, #tpu.memory_space<vmem>>) attributes {dimension_semantics = [#tpu.dimension_semantics<parallel>], iteration_bounds = array<i64: 1>, scalar_prefetch = 0 : i64, scratch_operands = 0 : i64, tpu.core_type = #tpu.core_type<tc>, window_params = [{pipeline_mode = #tpu.pipeline_mode<synchronous>, transform_indices = @transform_0, window_bounds = array<i64: 48, 128>}, {transform_indices = @transform_1, window_bounds = array<i64: 128, 14>}, {transform_indices = @transform_2, window_bounds = array<i64: 1, 128>}]} {
    %c0 = arith.constant 0 : index
    %c0_0 = arith.constant 0 : index
    %0 = vector.load %arg2[%c0, %c0_0] : memref<128x14xf32, #tpu.memory_space<vmem>>, vector<128x14xf32>
    %1 = arith.truncf %0 : vector<128x14xf32> to vector<128x14xbf16>
    %c0_1 = arith.constant 0 : index
    %c0_2 = arith.constant 0 : index
    %2 = vector.load %arg1[%c0_1, %c0_2] : memref<48x128xf32, #tpu.memory_space<vmem>>, vector<14x14xf32>
    %3 = arith.truncf %2 : vector<14x14xf32> to vector<14x14xbf16>
    %c0_3 = arith.constant 0 : index
    %c123 = arith.constant 123 : index
    %4 = vector.load %arg1[%c0_3, %c123] : memref<48x128xf32, #tpu.memory_space<vmem>>, vector<14x1xf32>
    %cst = arith.constant dense<0.000000e+00> : vector<14x128xf32>
    %5 = tpu.matmul %3, %1, %cst {dimension_numbers = #tpu.dot_dimension_numbers<[1], [1], [0], [0], [0, 0, 1, 0], [], []>} : vector<14x14xbf16>, vector<128x14xbf16>, vector<14x128xf32> -> vector<14x128xf32>
    %6 = vector.broadcast %4 : vector<14x1xf32> to vector<14x128xf32>
    %7 = arith.addf %5, %6 : vector<14x128xf32>
    %cst_4 = arith.constant 0.000000e+00 : f32
    %8 = vector.broadcast %cst_4 : f32 to vector<14x128xf32>
    %9 = arith.cmpf ogt, %7, %8 : vector<14x128xf32>
    %cst_5 = arith.constant 0.00999999977 : f32
    %10 = vector.broadcast %cst_5 : f32 to vector<14x128xf32>
    %11 = arith.mulf %10, %7 : vector<14x128xf32>
    %12 = arith.select %9, %7, %11 : vector<14x128xi1>, vector<14x128xf32>
    %c16 = arith.constant 16 : index
    %c0_6 = arith.constant 0 : index
    %13 = vector.load %arg1[%c16, %c0_6] : memref<48x128xf32, #tpu.memory_space<vmem>>, vector<8x14xf32>
    %14 = arith.truncf %13 : vector<8x14xf32> to vector<8x14xbf16>
    %c0_7 = arith.constant 0 : index
    %c124 = arith.constant 124 : index
    %15 = vector.load %arg1[%c0_7, %c124] : memref<48x128xf32, #tpu.memory_space<vmem>>, vector<8x1xf32>
    %16 = arith.truncf %12 : vector<14x128xf32> to vector<14x128xbf16>
    %cst_8 = arith.constant dense<0.000000e+00> : vector<8x128xf32>
    %17 = tpu.matmul %14, %16, %cst_8 {dimension_numbers = #tpu.dot_dimension_numbers<[1], [0], [0], [1], [0, 0, 1, 1], [], []>} : vector<8x14xbf16>, vector<14x128xbf16>, vector<8x128xf32> -> vector<8x128xf32>
    %18 = vector.broadcast %15 : vector<8x1xf32> to vector<8x128xf32>
    %19 = arith.addf %17, %18 : vector<8x128xf32>
    %cst_9 = arith.constant 0.000000e+00 : f32
    %20 = vector.broadcast %cst_9 : f32 to vector<8x128xf32>
    %21 = arith.cmpf ogt, %19, %20 : vector<8x128xf32>
    %cst_10 = arith.constant 0.00999999977 : f32
    %22 = vector.broadcast %cst_10 : f32 to vector<8x128xf32>
    %23 = arith.mulf %22, %19 : vector<8x128xf32>
    %24 = arith.select %21, %19, %23 : vector<8x128xi1>, vector<8x128xf32>
    %c24 = arith.constant 24 : index
    %c0_11 = arith.constant 0 : index
    %25 = vector.load %arg1[%c24, %c0_11] : memref<48x128xf32, #tpu.memory_space<vmem>>, vector<4x8xf32>
    %26 = arith.truncf %25 : vector<4x8xf32> to vector<4x8xbf16>
    %c0_12 = arith.constant 0 : index
    %c125 = arith.constant 125 : index
    %27 = vector.load %arg1[%c0_12, %c125] : memref<48x128xf32, #tpu.memory_space<vmem>>, vector<4x1xf32>
    %28 = arith.truncf %24 : vector<8x128xf32> to vector<8x128xbf16>
    %cst_13 = arith.constant dense<0.000000e+00> : vector<4x128xf32>
    %29 = tpu.matmul %26, %28, %cst_13 {dimension_numbers = #tpu.dot_dimension_numbers<[1], [0], [0], [1], [0, 0, 1, 1], [], []>} : vector<4x8xbf16>, vector<8x128xbf16>, vector<4x128xf32> -> vector<4x128xf32>
    %30 = vector.broadcast %27 : vector<4x1xf32> to vector<4x128xf32>
    %31 = arith.addf %29, %30 : vector<4x128xf32>
    %cst_14 = arith.constant 0.000000e+00 : f32
    %32 = vector.broadcast %cst_14 : f32 to vector<4x128xf32>
    %33 = arith.cmpf ogt, %31, %32 : vector<4x128xf32>
    %cst_15 = arith.constant 0.00999999977 : f32
    %34 = vector.broadcast %cst_15 : f32 to vector<4x128xf32>
    %35 = arith.mulf %34, %31 : vector<4x128xf32>
    %36 = arith.select %33, %31, %35 : vector<4x128xi1>, vector<4x128xf32>
    %c32 = arith.constant 32 : index
    %c0_16 = arith.constant 0 : index
    %37 = vector.load %arg1[%c32, %c0_16] : memref<48x128xf32, #tpu.memory_space<vmem>>, vector<2x4xf32>
    %38 = arith.truncf %37 : vector<2x4xf32> to vector<2x4xbf16>
    %c0_17 = arith.constant 0 : index
    %c126 = arith.constant 126 : index
    %39 = vector.load %arg1[%c0_17, %c126] : memref<48x128xf32, #tpu.memory_space<vmem>>, vector<2x1xf32>
    %40 = arith.truncf %36 : vector<4x128xf32> to vector<4x128xbf16>
    %cst_18 = arith.constant dense<0.000000e+00> : vector<2x128xf32>
    %41 = tpu.matmul %38, %40, %cst_18 {dimension_numbers = #tpu.dot_dimension_numbers<[1], [0], [0], [1], [0, 0, 1, 1], [], []>} : vector<2x4xbf16>, vector<4x128xbf16>, vector<2x128xf32> -> vector<2x128xf32>
    %42 = vector.broadcast %39 : vector<2x1xf32> to vector<2x128xf32>
    %43 = arith.addf %41, %42 : vector<2x128xf32>
    %cst_19 = arith.constant 0.000000e+00 : f32
    %44 = vector.broadcast %cst_19 : f32 to vector<2x128xf32>
    %45 = arith.cmpf ogt, %43, %44 : vector<2x128xf32>
    %cst_20 = arith.constant 0.00999999977 : f32
    %46 = vector.broadcast %cst_20 : f32 to vector<2x128xf32>
    %47 = arith.mulf %46, %43 : vector<2x128xf32>
    %48 = arith.select %45, %43, %47 : vector<2x128xi1>, vector<2x128xf32>
    %c40 = arith.constant 40 : index
    %c0_21 = arith.constant 0 : index
    %49 = vector.load %arg1[%c40, %c0_21] : memref<48x128xf32, #tpu.memory_space<vmem>>, vector<1x2xf32>
    %50 = arith.truncf %49 : vector<1x2xf32> to vector<1x2xbf16>
    %c0_22 = arith.constant 0 : index
    %c127 = arith.constant 127 : index
    %51 = vector.load %arg1[%c0_22, %c127] : memref<48x128xf32, #tpu.memory_space<vmem>>, vector<1x1xf32>
    %52 = arith.truncf %48 : vector<2x128xf32> to vector<2x128xbf16>
    %cst_23 = arith.constant dense<0.000000e+00> : vector<1x128xf32>
    %53 = tpu.matmul %50, %52, %cst_23 {dimension_numbers = #tpu.dot_dimension_numbers<[1], [0], [0], [1], [0, 0, 1, 1], [], []>} : vector<1x2xbf16>, vector<2x128xbf16>, vector<1x128xf32> -> vector<1x128xf32>
    %54 = vector.broadcast %51 : vector<1x1xf32> to vector<1x128xf32>
    %55 = arith.addf %53, %54 : vector<1x128xf32>
    %cst_24 = arith.constant 0.000000e+00 : f32
    %56 = vector.broadcast %cst_24 : f32 to vector<1x128xf32>
    %57 = arith.subf %56, %55 : vector<1x128xf32>
    %58 = math.exp %57 : vector<1x128xf32>
    %cst_25 = arith.constant 1.000000e+00 : f32
    %59 = vector.broadcast %cst_25 : f32 to vector<1x128xf32>
    %60 = arith.addf %59, %58 : vector<1x128xf32>
    %61 = tpu.reciprocal %60 {approx = true} : vector<1x128xf32> -> vector<1x128xf32>
    %c0_26 = arith.constant 0 : index
    %c0_27 = arith.constant 0 : index
    %62 = vector.load %arg3[%c0_26, %c0_27] : memref<1x128xf32, #tpu.memory_space<vmem>>, vector<1x128xf32>
    tpu.vector_store %arg3[%c0_26, %c0_27], %61 {strides = array<i32>} : memref<1x128xf32, #tpu.memory_space<vmem>>, vector<1x128xf32>,
    return
  }
  func.func @transform_0(%arg0: i32) -> (i32, i32) {
    %c0_i32 = arith.constant 0 : i32
    %c0_i32_0 = arith.constant 0 : i32
    %c0_i32_1 = arith.constant 0 : i32
    return %c0_i32, %c0_i32_0 : i32, i32
  }
  func.func @transform_1(%arg0: i32) -> (i32, i32) {
    %c0_i32 = arith.constant 0 : i32
    %c0_i32_0 = arith.constant 0 : i32
    return %arg0, %c0_i32 : i32, i32
  }
  func.func @transform_2(%arg0: i32) -> (i32, i32) {
    %c0_i32 = arith.constant 0 : i32
    %c0_i32_0 = arith.constant 0 : i32
    return %c0_i32, %arg0 : i32, i32
  }
}

</mosaic_0001>

<llo_original>
// kernel: tpu_custom_call.1
$region0: #{tpu_custom_call.1}
  #allocation0 [shape = 'u32[]', space=smem, size = 0x4, offset = 0x4, fixed_abs, tag = 'smem constant byte address 0x4 - core index']
  #allocation1 [shape = 'u32[144,128]{1,0:T(1,128)}', space=vmem, size = 0x12000, scoped, tag = 'internal scratch']
  %s0 = inlined_call_operand.vmem [shape: f32[48,128], index: 0, kind: input, shape index: {}]
  %s1 = inlined_call_operand.vmem [shape: f32[128,14], index: 1, kind: input, shape index: {}]
  %s2 = inlined_call_operand.hbm [shape: f32[1,128], index: 2, kind: output, shape index: {}]
  %s3 = sld [smem:[#allocation0]]
  $region18: #{tpu_custom_call.1} parent=0
    _
  %s5 = ssub.s32 1, %s3
  %s6 = scalar_select 0, %s5, %s3
  $region1: #{tpu_custom_call.1} parent=0
    #allocation2 [shape = 'u8[512]{0}', space=vmem, size = 0x400, scoped, tag = 'output window, operand 0, single buffered']
    #allocation3 [shape = 's32[1]{0}', space=sflag, size = 0x4, scoped, tag = 'scoped memory for tpu_custom_call.1']
    %7 = vsyncpa [#allocation3], 0
    // Predicated region
    $region2: #{tpu_custom_call.1} parent=1 // pred_check
      _
    $region3: #{tpu_custom_call.1} parent=1 // pred_check_branch
      %9 = sbr.rel (0) target = $region5
    $region4: #{tpu_custom_call.1} parent=1 // pred_region
      _
    $region5: #{tpu_custom_call.1} parent=1 // pred_fallthru
      _
    // Predicated region
    $region6: #{tpu_custom_call.1} parent=1 // pred_check
      _
    $region7: #{tpu_custom_call.1} parent=1 // pred_check_branch
      %11 = sbr.rel (0) target = $region9
    $region8: #{tpu_custom_call.1} parent=1 // pred_region
      _
    $region9: #{tpu_custom_call.1} parent=1 // pred_fallthru
      _
    %v13 = vld [vmem:[%s1] sm:$0xff]
    %v14 = vld [vmem:[%s1 + $0x8] sm:$0xff]
    %v15 = vld [vmem:[%s1 + $0x10] sm:$0xff]
    %v16 = vld [vmem:[%s1 + $0x18] sm:$0xff]
    %v17 = vld [vmem:[%s1 + $0x20] sm:$0xff]
    %v18 = vld [vmem:[%s1 + $0x28] sm:$0xff]
    %v19 = vld [vmem:[%s1 + $0x30] sm:$0xff]
    %v20 = vld [vmem:[%s1 + $0x38] sm:$0xff]
    %v21 = vld [vmem:[%s1 + $0x40] sm:$0xff]
    %v22 = vld [vmem:[%s1 + $0x48] sm:$0xff]
    %v23 = vld [vmem:[%s1 + $0x50] sm:$0xff]
    %v24 = vld [vmem:[%s1 + $0x58] sm:$0xff]
    %v25 = vld [vmem:[%s1 + $0x60] sm:$0xff]
    %v26 = vld [vmem:[%s1 + $0x68] sm:$0xff]
    %v27 = vld [vmem:[%s1 + $0x70] sm:$0xff]
    %v28 = vld [vmem:[%s1 + $0x78] sm:$0xff]
    %v29 = vpack.c.bf16 %v14, %v13
    %v30 = vpack.c.bf16 %v16, %v15
    %v31 = vpack.c.bf16 %v18, %v17
    %v32 = vpack.c.bf16 %v20, %v19
    %v33 = vpack.c.bf16 %v22, %v21
    %v34 = vpack.c.bf16 %v24, %v23
    %v35 = vpack.c.bf16 %v26, %v25
    %v36 = vpack.c.bf16 %v28, %v27
    %v37 = vld [vmem:[%s0] sm:$0xff]
    %v38 = vld [vmem:[%s0 + $0x8] sm:$0x3f]
    %v39 = vpack.c.bf16 %v38, %v37
    %41 = vset.pattern.permute.xlu0 123
    %42 = vperm.xlu0 %41, %v37
    %v43 = vpop.permute.xlu0 %42
    %46 = vset.pattern.permute.xlu0 123
    %47 = vperm.xlu0 %46, %v38
    %v48 = vpop.permute.xlu0 %47
    %vm50 = vcmask 113664
    %v52 = vsel %vm50, %v39, 0
    %v55 = vsel %vm50, %v29, 0
    %v58 = vsel %vm50, %v30, 0
    %v61 = vsel %vm50, %v31, 0
    %v64 = vsel %vm50, %v32, 0
    %v67 = vsel %vm50, %v33, 0
    %v70 = vsel %vm50, %v34, 0
    %v73 = vsel %vm50, %v35, 0
    %v76 = vsel %vm50, %v36, 0
    %78 = vmatprep.subr.bf16.mxu0 0
    %79 = vmatpush1.bf16.xpose.msra.mxu0 %v55
    %80 = vmatprep.subr.bf16.mxu0 0
    %81 = vmatpush1.bf16.xpose.msra.mxu0 %v58
    %82 = vmatprep.subr.bf16.mxu0 0
    %83 = vmatpush1.bf16.xpose.msra.mxu0 %v61
    %84 = vmatprep.subr.bf16.mxu0 0
    %85 = vmatpush1.bf16.xpose.msra.mxu0 %v64
    %86 = vmatprep.subr.bf16.mxu0 0
    %87 = vmatpush1.bf16.xpose.msra.mxu0 %v67
    %88 = vmatprep.subr.bf16.mxu0 0
    %89 = vmatpush1.bf16.xpose.msra.mxu0 %v70
    %90 = vmatprep.subr.bf16.mxu0 0
    %91 = vmatpush1.bf16.xpose.msra.mxu0 %v73
    %92 = vmatprep.subr.bf16.mxu0 0
    %93 = vmatpush1.bf16.xpose.msra.mxu0 %v76
    %94 = vmatprep.subr.bf16.mxu0 0
    %95 = vmatpush1.bf16.xpose.msra.mxu0 0
    %96 = vmatprep.subr.bf16.mxu0 0
    %97 = vmatpush1.bf16.xpose.msra.mxu0 0
    %98 = vmatprep.subr.bf16.mxu0 0
    %99 = vmatpush1.bf16.xpose.msra.mxu0 0
    %100 = vmatprep.subr.bf16.mxu0 0
    %101 = vmatpush1.bf16.xpose.msra.mxu0 0
    %102 = vmatprep.subr.bf16.mxu0 0
    %103 = vmatpush1.bf16.xpose.msra.mxu0 0
    %104 = vmatprep.subr.bf16.mxu0 0
    %105 = vmatpush1.bf16.xpose.msra.mxu0 0
    %106 = vmatprep.subr.bf16.mxu0 0
    %107 = vmatpush1.bf16.xpose.msra.mxu0 0
    %108 = vmatprep.subr.bf16.mxu0 0
    %109 = vmatpush1.bf16.xpose.msra.mxu0 0
    %110 = vmatprep.mubr.bf16.mxu0 0
    %111 = vmatmul.mubr.bf16.gmra.mrb[0].mxu0 %v52
    %v112 = vpop.f32.mrb[0].mxu0
    %v113 = vadd.f32 %v43, %v112
    %v114 = vpop.f32.mrb[0].mxu0
    %v115 = vpop.f32.mrb[0].mxu0
    %v116 = vadd.f32 %v48, %v115
    %v117 = vpop.f32.mrb[0].mxu0
    %118 = vdwg.mxu0
    %vm119 = vcmp.gt.f32.partialorder %v113, 0.0
    %vm120 = vcmp.gt.f32.partialorder %v116, 0.0
    %v121 = vmul.f32 %v113, 0.01
    %v122 = vmul.f32 %v116, 0.01
    %v123 = vsel %vm119, %v113, %v121
    %v124 = vsel %vm120, %v116, %v122
    %v125 = vld [vmem:[%s0 + $0x10] sm:$0xff]
    %v126 = vpack.c.bf16 %v125, %v125
    %v127 = vld [vmem:[%s0] sm:$0xff]
    %v128 = vpack.c.bf16 %v124, %v123
    %130 = vset.pattern.permute.xlu0 124
    %131 = vperm.xlu0 %130, %v127
    %v132 = vpop.permute.xlu0 %131
    %v135 = vsel %vm50, %v126, 0
    %vm137 = vcmask 1046528
    %v139 = vsel %vm137, %v128, 0
    %141 = vmatprep.subr.bf16.mxu0 0
    %142 = vmatpush1.bf16.msra.mxu0 %v139
    %143 = vmatprep.subr.bf16.mxu0 0
    %144 = vmatpush1.bf16.msra.mxu0 0
    %145 = vmatprep.subr.bf16.mxu0 0
    %146 = vmatpush1.bf16.msra.mxu0 0
    %147 = vmatprep.subr.bf16.mxu0 0
    %148 = vmatpush1.bf16.msra.mxu0 0
    %149 = vmatprep.subr.bf16.mxu0 0
    %150 = vmatpush1.bf16.msra.mxu0 0
    %151 = vmatprep.subr.bf16.mxu0 0
    %152 = vmatpush1.bf16.msra.mxu0 0
    %153 = vmatprep.subr.bf16.mxu0 0
    %154 = vmatpush1.bf16.msra.mxu0 0
    %155 = vmatprep.subr.bf16.mxu0 0
    %156 = vmatpush1.bf16.msra.mxu0 0
    %157 = vmatprep.subr.bf16.mxu0 0
    %158 = vmatpush1.bf16.msra.mxu0 0
    %159 = vmatprep.subr.bf16.mxu0 0
    %160 = vmatpush1.bf16.msra.mxu0 0
    %161 = vmatprep.subr.bf16.mxu0 0
    %162 = vmatpush1.bf16.msra.mxu0 0
    %163 = vmatprep.subr.bf16.mxu0 0
    %164 = vmatpush1.bf16.msra.mxu0 0
    %165 = vmatprep.subr.bf16.mxu0 0
    %166 = vmatpush1.bf16.msra.mxu0 0
    %167 = vmatprep.subr.bf16.mxu0 0
    %168 = vmatpush1.bf16.msra.mxu0 0
    %169 = vmatprep.subr.bf16.mxu0 0
    %170 = vmatpush1.bf16.msra.mxu0 0
    %171 = vmatprep.subr.bf16.mxu0 0
    %172 = vmatpush1.bf16.msra.mxu0 0
    %173 = vmatprep.mubr.bf16.mxu0 0
    %174 = vmatmul.mubr.bf16.gmra.mrb[0].mxu0 %v135
    %v175 = vpop.f32.mrb[0].mxu0
    %v176 = vadd.f32 %v132, %v175
    %v177 = vpop.f32.mrb[0].mxu0
    %v178 = vpop.f32.mrb[0].mxu0
    %v179 = vpop.f32.mrb[0].mxu0
    %180 = vdwg.mxu0
    %vm181 = vcmp.gt.f32.partialorder %v176, 0.0
    %v182 = vmul.f32 %v176, 0.01
    %v183 = vsel %vm181, %v176, %v182
    %v184 = vld [vmem:[%s0 + $0x18] sm:$0xf]
    %v185 = vpack.c.bf16 %v184, %v184
    %v186 = vld [vmem:[%s0] sm:$0xf]
    %v187 = vpack.c.bf16 %v183, %v183
    %189 = vset.pattern.permute.xlu0 125
    %190 = vperm.xlu0 %189, %v186
    %v191 = vpop.permute.xlu0 %190
    %vm193 = vcmask 64512
    %v195 = vsel %vm193, %v185, 0
    %vm197 = vcmask 1043456
    %v199 = vsel %vm197, %v187, 0
    %201 = vmatprep.subr.bf16.mxu0 0
    %202 = vmatpush1.bf16.msra.mxu0 %v199
    %203 = vmatprep.subr.bf16.mxu0 0
    %204 = vmatpush1.bf16.msra.mxu0 0
    %205 = vmatprep.subr.bf16.mxu0 0
    %206 = vmatpush1.bf16.msra.mxu0 0
    %207 = vmatprep.subr.bf16.mxu0 0
    %208 = vmatpush1.bf16.msra.mxu0 0
    %209 = vmatprep.subr.bf16.mxu0 0
    %210 = vmatpush1.bf16.msra.mxu0 0
    %211 = vmatprep.subr.bf16.mxu0 0
    %212 = vmatpush1.bf16.msra.mxu0 0
    %213 = vmatprep.subr.bf16.mxu0 0
    %214 = vmatpush1.bf16.msra.mxu0 0
    %215 = vmatprep.subr.bf16.mxu0 0
    %216 = vmatpush1.bf16.msra.mxu0 0
    %217 = vmatprep.subr.bf16.mxu0 0
    %218 = vmatpush1.bf16.msra.mxu0 0
    %219 = vmatprep.subr.bf16.mxu0 0
    %220 = vmatpush1.bf16.msra.mxu0 0
    %221 = vmatprep.subr.bf16.mxu0 0
    %222 = vmatpush1.bf16.msra.mxu0 0
    %223 = vmatprep.subr.bf16.mxu0 0
    %224 = vmatpush1.bf16.msra.mxu0 0
    %225 = vmatprep.subr.bf16.mxu0 0
    %226 = vmatpush1.bf16.msra.mxu0 0
    %227 = vmatprep.subr.bf16.mxu0 0
    %228 = vmatpush1.bf16.msra.mxu0 0
    %229 = vmatprep.subr.bf16.mxu0 0
    %230 = vmatpush1.bf16.msra.mxu0 0
    %231 = vmatprep.subr.bf16.mxu0 0
    %232 = vmatpush1.bf16.msra.mxu0 0
    %233 = vmatprep.mubr.bf16.mxu0 0
    %234 = vmatmul.mubr.bf16.gmra.mrb[0].mxu0 %v195
    %v235 = vpop.f32.mrb[0].mxu0
    %v236 = vadd.f32 %v191, %v235
    %v237 = vpop.f32.mrb[0].mxu0
    %v238 = vpop.f32.mrb[0].mxu0
    %v239 = vpop.f32.mrb[0].mxu0
    %240 = vdwg.mxu0
    %vm241 = vcmp.gt.f32.partialorder %v236, 0.0
    %v242 = vmul.f32 %v236, 0.01
    %v243 = vsel %vm241, %v236, %v242
    %v244 = vld [vmem:[%s0 + $0x20] sm:$0x3]
    %v245 = vpack.c.bf16 %v244, %v244
    %v246 = vld [vmem:[%s0] sm:$0x3]
    %v247 = vpack.c.bf16 %v243, %v243
    %249 = vset.pattern.permute.xlu0 126
    %250 = vperm.xlu0 %249, %v246
    %v251 = vpop.permute.xlu0 %250
    %vm253 = vcmask 31744
    %v255 = vsel %vm253, %v245, 0
    %vm257 = vcmask 1041408
    %v259 = vsel %vm257, %v247, 0
    %261 = vmatprep.subr.bf16.mxu0 0
    %262 = vmatpush1.bf16.msra.mxu0 %v259
    %263 = vmatprep.subr.bf16.mxu0 0
    %264 = vmatpush1.bf16.msra.mxu0 0
    %265 = vmatprep.subr.bf16.mxu0 0
    %266 = vmatpush1.bf16.msra.mxu0 0
    %267 = vmatprep.subr.bf16.mxu0 0
    %268 = vmatpush1.bf16.msra.mxu0 0
    %269 = vmatprep.subr.bf16.mxu0 0
    %270 = vmatpush1.bf16.msra.mxu0 0
    %271 = vmatprep.subr.bf16.mxu0 0
    %272 = vmatpush1.bf16.msra.mxu0 0
    %273 = vmatprep.subr.bf16.mxu0 0
    %274 = vmatpush1.bf16.msra.mxu0 0
    %275 = vmatprep.subr.bf16.mxu0 0
    %276 = vmatpush1.bf16.msra.mxu0 0
    %277 = vmatprep.subr.bf16.mxu0 0
    %278 = vmatpush1.bf16.msra.mxu0 0
    %279 = vmatprep.subr.bf16.mxu0 0
    %280 = vmatpush1.bf16.msra.mxu0 0
    %281 = vmatprep.subr.bf16.mxu0 0
    %282 = vmatpush1.bf16.msra.mxu0 0
    %283 = vmatprep.subr.bf16.mxu0 0
    %284 = vmatpush1.bf16.msra.mxu0 0
    %285 = vmatprep.subr.bf16.mxu0 0
    %286 = vmatpush1.bf16.msra.mxu0 0
    %287 = vmatprep.subr.bf16.mxu0 0
    %288 = vmatpush1.bf16.msra.mxu0 0
    %289 = vmatprep.subr.bf16.mxu0 0
    %290 = vmatpush1.bf16.msra.mxu0 0
    %291 = vmatprep.subr.bf16.mxu0 0
    %292 = vmatpush1.bf16.msra.mxu0 0
    %293 = vmatprep.mubr.bf16.mxu0 0
    %294 = vmatmul.mubr.bf16.gmra.mrb[0].mxu0 %v255
    %v295 = vpop.f32.mrb[0].mxu0
    %v296 = vadd.f32 %v251, %v295
    %v297 = vpop.f32.mrb[0].mxu0
    %v298 = vpop.f32.mrb[0].mxu0
    %v299 = vpop.f32.mrb[0].mxu0
    %300 = vdwg.mxu0
    %vm301 = vcmp.gt.f32.partialorder %v296, 0.0
    %v302 = vmul.f32 %v296, 0.01
    %v303 = vsel %vm301, %v296, %v302
    %v304 = vld [vmem:[%s0 + $0x28] sm:$0x1]
    %v305 = vpack.c.bf16 %v304, %v304
    %v306 = vld [vmem:[%s0] sm:$0x1]
    %v307 = vpack.c.bf16 %v303, %v303
    %309 = vset.pattern.permute.xlu0 127
    %310 = vperm.xlu0 %309, %v306
    %v311 = vpop.permute.xlu0 %310
    %vm313 = vcmask 15360
    %v315 = vsel %vm313, %v305, 0
    %vm317 = vcmask 1040384
    %v319 = vsel %vm317, %v307, 0
    %321 = vmatprep.subr.bf16.mxu0 0
    %322 = vmatpush1.bf16.msra.mxu0 %v319
    %323 = vmatprep.subr.bf16.mxu0 0
    %324 = vmatpush1.bf16.msra.mxu0 0
    %325 = vmatprep.subr.bf16.mxu0 0
    %326 = vmatpush1.bf16.msra.mxu0 0
    %327 = vmatprep.subr.bf16.mxu0 0
    %328 = vmatpush1.bf16.msra.mxu0 0
    %329 = vmatprep.subr.bf16.mxu0 0
    %330 = vmatpush1.bf16.msra.mxu0 0
    %331 = vmatprep.subr.bf16.mxu0 0
    %332 = vmatpush1.bf16.msra.mxu0 0
    %333 = vmatprep.subr.bf16.mxu0 0
    %334 = vmatpush1.bf16.msra.mxu0 0
    %335 = vmatprep.subr.bf16.mxu0 0
    %336 = vmatpush1.bf16.msra.mxu0 0
    %337 = vmatprep.subr.bf16.mxu0 0
    %338 = vmatpush1.bf16.msra.mxu0 0
    %339 = vmatprep.subr.bf16.mxu0 0
    %340 = vmatpush1.bf16.msra.mxu0 0
    %341 = vmatprep.subr.bf16.mxu0 0
    %342 = vmatpush1.bf16.msra.mxu0 0
    %343 = vmatprep.subr.bf16.mxu0 0
    %344 = vmatpush1.bf16.msra.mxu0 0
    %345 = vmatprep.subr.bf16.mxu0 0
    %346 = vmatpush1.bf16.msra.mxu0 0
    %347 = vmatprep.subr.bf16.mxu0 0
    %348 = vmatpush1.bf16.msra.mxu0 0
    %349 = vmatprep.subr.bf16.mxu0 0
    %350 = vmatpush1.bf16.msra.mxu0 0
    %351 = vmatprep.subr.bf16.mxu0 0
    %352 = vmatpush1.bf16.msra.mxu0 0
    %353 = vmatprep.mubr.bf16.mxu0 0
    %354 = vmatmul.mubr.bf16.gmra.mrb[0].mxu0 %v315
    %v355 = vpop.f32.mrb[0].mxu0
    %v356 = vadd.f32 %v311, %v355
    %v357 = vpop.f32.mrb[0].mxu0
    %v358 = vpop.f32.mrb[0].mxu0
    %v359 = vpop.f32.mrb[0].mxu0
    %360 = vdwg.mxu0
    %v361 = vsub.f32 0.0, %v356
    %v362 = vmul.f32 %v361, 1.442695
    %v363 = vpow.pop %v362
    %v364 = vadd.f32 %v363, 1.0
    %v365 = vrcp.pop %v364
    %366 = vst [vmem:[#allocation2] sm:$0x1] %v365
    // Predicated region
    $region10: #{tpu_custom_call.1} parent=1 // pred_check
      _
    $region11: #{tpu_custom_call.1} parent=1 // pred_check_branch
      %368 = sbr.rel (0) target = $region13
    $region12: #{tpu_custom_call.1} parent=1 // pred_region
      %s370 = ssub.s32 16, 16
      %371 = vsyncadd [#allocation3], %s370
      %s373 = sshll.u32 [#allocation2], 4
      %s374 = int_to_ptr.vmem [resolvable:$true] %s373
      %376 = dma.vmem_to_hbm [thread:$0]  %s374, 16, %s2, [#allocation3]
    $region13: #{tpu_custom_call.1} parent=1 // pred_fallthru
      _
    // Predicated region
    $region14: #{tpu_custom_call.1} parent=1 // pred_check
      _
    $region15: #{tpu_custom_call.1} parent=1 // pred_check_branch
      %378 = sbr.rel (0) target = $region17
    $region16: #{tpu_custom_call.1} parent=1 // pred_region
      %379 = dma.done [#allocation3], 16
    $region17: #{tpu_custom_call.1} parent=1 // pred_fallthru
      _
    %380 = vsyncpa [#allocation3], 1

</llo_original>
